<compile_context>
chip_gen: v6e
topology: v6e:2x2x1
jax: 0.10.0
libtpu: 0.0.40
codegen_flags: <defaults>
</compile_context>

<pallas_src>
import jax
import jax.numpy as jnp
from jax import lax
from jax.experimental import pallas as pl
from jax.experimental.pallas import tpu as pltpu

_LANE = 128


def _sublane_multiple(*dtypes):
    """Minimum second-minor block multiple given the streamed dtypes."""
    m = 8
    for dt in dtypes:
        isz = jnp.dtype(dt).itemsize
        if isz == 2:
            m = max(m, 16)
        elif isz == 1:
            m = max(m, 32)
    return m


def _default_block_rows():
    """Per-generation block size (rows of 128 lanes)."""
    try:
        kind = jax.devices()[0].device_kind.lower()
    except Exception:
        kind = ""
    if "v5e" in kind or "v5 lite" in kind or "v5lite" in kind:
        return 4096   # 2 MiB/stream: safe vs v5e's 16 MiB scoped-VMEM default
    if "v6" in kind or "v7" in kind or "7x" in kind:
        return 8192   # 4 MiB/stream: < 32 MiB scoped default, amortizes step overhead
    return 2048       # conservative default for older / unknown chips


def _pick_inner_rows(block_rows, sub, target=512):
    """Largest divisor of block_rows that is <= target and a multiple of sub."""
    if block_rows <= target:
        return block_rows
    cand = (target // sub) * sub
    while cand >= sub:
        if block_rows % cand == 0:
            return cand
        cand -= sub
    return block_rows


def _make_kernel(*, weight_mode, scaling, block_rows, inner_rows, rows_valid,
                 inner_blocks, needs_mask):
    n_groups = block_rows // inner_rows
    unrolled = n_groups <= 16   # short fixed loops: unroll at trace time

    def kernel(*refs):
        if weight_mode is None:
            x_ref, t_ref, o_ref = refs
            w_ref = None
        else:
            x_ref, t_ref, w_ref, o_ref = refs

        c = pl.program_id(0)   # chunk axis ("parallel": sharded across cores)
        k = pl.program_id(1)   # reduction axis within a chunk ("arbitrary")

        @pl.when(k == 0)
        def _init():
            o_ref[...] = jnp.zeros_like(o_ref)

        start_row = (c * inner_blocks + k) * block_rows

        w_res = None
        if weight_mode == "resident":
            # Whole weight period (batch/128, 128); block_rows is a multiple of
            # it, so every row group multiplies by the same slab.
            w_res = w_ref[...].astype(jnp.float32)

        def group_sum(row0, masked):
            x = x_ref[pl.ds(row0, inner_rows), :].astype(jnp.float32)
            if scaling is not None:
                x = x * jnp.float32(scaling)
            d = x - t_ref[pl.ds(row0, inner_rows), :].astype(jnp.float32)
            v = d * d
            if weight_mode == "stream":
                v = v * w_ref[pl.ds(row0, inner_rows), :].astype(jnp.float32)
            elif weight_mode == "resident":
                v = v * w_res
            if masked:
                # Zero rows past the real data (ragged final block only).
                rows_left = rows_valid - start_row - row0
                rid = lax.broadcasted_iota(jnp.int32, v.shape, 0)
                v = jnp.where(rid < rows_left, v, 0.0)
            # Collapse the row group onto one (8, 128) vreg with VPU adds.
            return jnp.sum(v.reshape(-1, 8, _LANE), axis=0)

        def accumulate(masked):
            acc = jnp.zeros((8, _LANE), jnp.float32)
            if unrolled:
                for g in range(n_groups):
                    acc = acc + group_sum(g * inner_rows, masked)
            else:
                def body(g, a):
                    row0 = pl.multiple_of(g * inner_rows, inner_rows)
                    return a + group_sum(row0, masked)
                acc = lax.fori_loop(0, n_groups, body, acc)
            o_ref[...] += acc[None]

        if not needs_mask:
            # Hot path: no per-step mask work at all.
            accumulate(False)
        else:
            block_end = start_row + block_rows

            @pl.when(block_end <= rows_valid)
            def _full():
                accumulate(False)

            @pl.when(jnp.logical_and(start_row < rows_valid,
                                     block_end > rows_valid))
            def _ragged():
                accumulate(True)
            # Fully-overshoot clamped blocks (odd block count split across two
            # chunks) skip compute entirely.

    return kernel


def resp_mse_loss(inputs, targets, weight=None, date=None, *, alpha=None,
                  scaling=None, resp_index=None, reduction="mean",
                  block_rows=None):
    """JAX/Pallas equivalent of RespMSELoss.forward (reduction='mean'|'sum')."""
    del date, alpha  # unused, kept for signature parity with the torch module

    if resp_index is not None and len(resp_index) < 5:
        idx = jnp.asarray(resp_index, dtype=jnp.int32)
        inputs = inputs[..., idx]
        targets = targets[..., idx]

    n_targets = int(inputs.shape[-1])
    x = inputs.reshape(-1)
    t = targets.reshape(-1)
    n = int(x.shape[0])

    weighted = weight is not None
    w = None
    batch = 0
    if weighted:
        w = jnp.asarray(weight).reshape(-1)
        batch = int(w.shape[0])
        if batch * n_targets != n:
            raise ValueError("weight size incompatible with flattened loss")

    if reduction == "mean":
        denom = float(max(n, 1))
    elif reduction == "sum":
        denom = None
    else:
        # TODO(synk): reduction='none' (per-element loss output) not implemented.
        raise NotImplementedError("reduction must be 'mean' or 'sum'")

    dts = [x.dtype, t.dtype] + ([w.dtype] if weighted else [])
    sub = _sublane_multiple(*dts)

    # Rows handled by the kernel: whole sublane groups of 128 lanes.  The small
    # remainder (< sub*128 + 128 elements) is summed with plain jnp below, so
    # no jnp.pad / full-stream copies are needed for alignment.
    rows = ((n // _LANE) // sub) * sub
    aligned = rows * _LANE
    rem = n - aligned

    tail_sum = jnp.float32(0.0)
    if rem:
        xt = x[aligned:].astype(jnp.float32)
        tt = t[aligned:].astype(jnp.float32)
        if scaling is not None:
            xt = xt * jnp.float32(scaling)
        lt = (xt - tt) ** 2
        if weighted:
            widx = jnp.arange(aligned, n, dtype=jnp.int32) % batch
            lt = lt * w[widx].astype(jnp.float32)
        tail_sum = jnp.sum(lt)

    if rows == 0:
        total = tail_sum
        return total if denom is None else total / jnp.float32(denom)

    xp = x if rem == 0 else x[:aligned]
    tp = t if rem == 0 else t[:aligned]
    x2 = xp.reshape(rows, _LANE)
    t2 = tp.reshape(rows, _LANE)

    if block_rows is None:
        block_rows = _default_block_rows()
    block_rows = max(sub, (min(int(block_rows), rows) // sub) * sub)

    # ---- weight plumbing: avoid materializing jnp.tile(w, n_targets) -------
    weight_mode = None    # kernel-side handling: None | "stream" | "resident"
    w_spec_kind = None    # BlockSpec flavour:    "stream" | "modular" | "resident"
    w_operand = None
    brows = 0
    if weighted:
        if n_targets == 1:
            weight_mode = w_spec_kind = "stream"
            w_operand = (w if rem == 0 else w[:aligned]).reshape(rows, _LANE)
        elif batch % _LANE == 0:
            brows = batch // _LANE
            if 64 <= brows <= 2048 and brows % sub == 0:
                # Whole weight slab stays VMEM-resident; make block_rows a
                # multiple of the weight period.
                weight_mode = w_spec_kind = "resident"
                block_rows = brows * max(1, block_rows // brows)
                w_operand = w.reshape(brows, _LANE)
            elif brows % block_rows == 0:
                # Huge batch: re-read the weight slab via a modular block index
                # instead of materializing the n-element tiled copy.
                weight_mode, w_spec_kind = "stream", "modular"
                w_operand = w.reshape(brows, _LANE)
        if weight_mode is None:
            # TODO(synk): awkward batch sizes (batch % 128 != 0, or a weight
            # period that fits neither the resident nor modular scheme) still
            # materialize the torch-style tiled weight in HBM.
            weight_mode = w_spec_kind = "stream"
            wf = jnp.tile(w, n_targets)
            w_operand = (wf if rem == 0 else wf[:aligned]).reshape(rows, _LANE)

    inner_rows = brows if weight_mode == "resident" else _pick_inner_rows(block_rows, sub)

    n_blocks = pl.cdiv(rows, block_rows)
    # 2-way chunk split feeds both TensorCores on multi-core chips; restrict it
    # to even (or large) block counts so single-core chips never waste a whole
    # duplicated block DMA on the clamped overshoot slot.
    num_chunks = 2 if (n_blocks >= 2 and (n_blocks % 2 == 0 or n_blocks >= 9)) else 1
    inner_blocks = pl.cdiv(n_blocks, num_chunks)
    clamp = num_chunks * inner_blocks != n_blocks
    needs_mask = (n_blocks * block_rows != rows) or clamp

    if clamp:
        def in_index(c, k):
            # Clamp so the (fully masked) overshoot blocks stay in bounds.
            return (jnp.minimum(c * inner_blocks + k, n_blocks - 1), 0)
    else:
        def in_index(c, k):
            return (c * inner_blocks + k, 0)

    in_specs = [pl.BlockSpec((block_rows, _LANE), in_index),
                pl.BlockSpec((block_rows, _LANE), in_index)]
    operands = [x2, t2]
    if weighted:
        if w_spec_kind == "stream":
            in_specs.append(pl.BlockSpec((block_rows, _LANE), in_index))
        elif w_spec_kind == "modular":
            wblocks = brows // block_rows
            in_specs.append(pl.BlockSpec(
                (block_rows, _LANE),
                lambda c, k: ((c * inner_blocks + k) % wblocks, 0)))
        else:  # resident: whole slab, constant block index
            in_specs.append(pl.BlockSpec((brows, _LANE), lambda c, k: (0, 0)))
        operands.append(w_operand)

    kernel = _make_kernel(weight_mode=weight_mode, scaling=scaling,
                          block_rows=block_rows, inner_rows=inner_rows,
                          rows_valid=rows, inner_blocks=inner_blocks,
                          needs_mask=needs_mask)

    # Explicit VMEM budget: double-buffered input blocks + resident weight +
    # bounded row-group temporaries.
    blk_bytes = 2 * block_rows * _LANE * (x2.dtype.itemsize + t2.dtype.itemsize)
    if weighted:
        w_rows = brows if w_spec_kind == "resident" else block_rows
        blk_bytes += 2 * w_rows * _LANE * w_operand.dtype.itemsize
    vmem_need = blk_bytes + 8 * inner_rows * _LANE * 4 + (1 << 20)
    vmem_limit = int(min(max(vmem_need, 32 << 20), 128 << 20))

    flops_per = 3 + (1 if scaling is not None else 0) + (1 if weighted else 0)
    bytes_in = sum(int(a.size) * a.dtype.itemsize for a in operands)
    cost = pl.CostEstimate(flops=rows * _LANE * flops_per,
                           transcendentals=0,
                           bytes_accessed=bytes_in + num_chunks * 8 * _LANE * 4)

    partials = pl.pallas_call(
        kernel,
        out_shape=jax.ShapeDtypeStruct((num_chunks, 8, _LANE), jnp.float32),
        grid_spec=pltpu.PrefetchScalarGridSpec(
            num_scalar_prefetch=0,
            grid=(num_chunks, inner_blocks),
            in_specs=in_specs,
            out_specs=pl.BlockSpec((1, 8, _LANE), lambda c, k: (c, 0, 0)),
        ),
        compiler_params=pltpu.CompilerParams(
            dimension_semantics=("parallel", "arbitrary"),
            vmem_limit_bytes=vmem_limit),
        cost_estimate=cost,
    )(*operands)

    total = jnp.sum(partials) + tail_sum
    return total if denom is None else total / jnp.float32(denom)


def _reference(inputs, targets, weight=None, *, scaling=None, resp_index=None,
               reduction="mean"):
    """Pure-jnp replica of the torch forward (including the weight quirk)."""
    if resp_index is not None and len(resp_index) < 5:
        idx = jnp.asarray(resp_index, dtype=jnp.int32)
        inputs = inputs[..., idx]
        targets = targets[..., idx]
    n_targets = inputs.shape[-1]
    if scaling is not None:
        inputs = inputs * scaling
    x = inputs.reshape(-1).astype(jnp.float32)
    t = targets.reshape(-1).astype(jnp.float32)
    loss = (x - t) ** 2
    if weight is not None:
        wv = jnp.asarray(weight).reshape(-1)
        if n_targets > 1:
            wv = jnp.tile(wv, n_targets)
        loss = loss * wv.astype(jnp.float32)
    return loss.sum() if reduction == "sum" else loss.mean()


if __name__ == "__main__":
    key = jax.random.PRNGKey(0)
    ks = jax.random.split(key, 12)

    # 1) weighted + resp_index + scaling, mean (small, wrapper-tail + kernel).
    x1 = jax.random.normal(ks[0], (512, 5), jnp.float32)
    t1 = jax.random.normal(ks[1], (512, 5), jnp.float32)
    w1 = jax.random.uniform(ks[2], (512,), jnp.float32)
    o1 = jax.block_until_ready(resp_mse_loss(x1, t1, w1, scaling=0.5,
                                             resp_index=(0, 1, 3)))
    r1 = _reference(x1, t1, w1, scaling=0.5, resp_index=(0, 1, 3))
    assert jnp.allclose(o1, r1, rtol=1e-4, atol=1e-5), (o1, r1)

    # 2) unweighted, lane-misaligned length (wrapper tail path), sum.
    x2 = jax.random.normal(ks[3], (300, 5), jnp.float32)
    t2 = jax.random.normal(ks[4], (300, 5), jnp.float32)
    o2 = jax.block_until_ready(resp_mse_loss(x2, t2, reduction="sum"))
    r2 = _reference(x2, t2, reduction="sum")
    assert jnp.allclose(o2, r2, rtol=1e-4, atol=1e-3), (o2, r2)

    # 3) weighted, n_targets > 1, VMEM-resident weight slab (no tiled copy).
    x3 = jax.random.normal(ks[5], (8192, 4), jnp.float32)
    t3 = jax.random.normal(ks[6], (8192, 4), jnp.float32)
    w3 = jax.random.uniform(ks[7], (8192,), jnp.float32)
    o3 = jax.block_until_ready(resp_mse_loss(x3, t3, w3))
    r3 = _reference(x3, t3, w3)
    assert jnp.allclose(o3, r3, rtol=1e-4, atol=1e-5), (o3, r3)

    # 4) multi-block, 2-chunk "parallel" grid + ragged final block (forced
    #    small blocks to exercise the pl.when-gated mask path).
    x4 = jax.random.normal(ks[8], (2048, 5), jnp.float32)
    t4 = jax.random.normal(ks[9], (2048, 5), jnp.float32)
    o4 = jax.block_until_ready(resp_mse_loss(x4, t4, block_rows=24))
    r4 = _reference(x4, t4)
    assert jnp.allclose(o4, r4, rtol=1e-4, atol=1e-5), (o4, r4)

    # 5) weighted n_targets==1, odd block size -> in-kernel fori_loop path.
    x5 = jax.random.normal(ks[10], (68800, 1), jnp.float32)
    t5 = jax.random.normal(ks[11], (68800, 1), jnp.float32)
    w5 = jax.random.uniform(ks[2], (68800,), jnp.float32)
    o5 = jax.block_until_ready(resp_mse_loss(x5, t5, w5, block_rows=536))
    r5 = _reference(x5, t5, w5)
    assert jnp.allclose(o5, r5, rtol=1e-4, atol=1e-5), (o5, r5)

    print("KERNEL_OK")
</pallas_src>

<mosaic_0001>
module attributes {stable_mosaic.version = 11 : i64} {
  func.func @kernel(%arg0: i32, %arg1: i32, %arg2: memref<8x128xf32, #tpu.memory_space<vmem>>, %arg3: memref<8x128xf32, #tpu.memory_space<vmem>>, %arg4: memref<8x128xf32, #tpu.memory_space<vmem>>, %arg5: memref<1x8x128xf32, #tpu.memory_space<vmem>>) attributes {dimension_semantics = [#tpu.dimension_semantics<parallel>, #tpu.dimension_semantics<arbitrary>], iteration_bounds = array<i64: 1, 1>, scalar_prefetch = 0 : i64, scratch_operands = 0 : i64, tpu.core_type = #tpu.core_type<tc>, window_params = [{transform_indices = @transform_0, window_bounds = array<i64: 8, 128>}, {transform_indices = @transform_1, window_bounds = array<i64: 8, 128>}, {transform_indices = @transform_2, window_bounds = array<i64: 8, 128>}, {transform_indices = @transform_3, window_bounds = array<i64: 1, 8, 128>}]} {
    %c0_i32 = arith.constant 0 : i32
    %0 = arith.cmpi eq, %arg1, %c0_i32 : i32
    %1 = arith.extui %0 : i1 to i32
    %c0_i32_0 = arith.constant 0 : i32
    %2 = arith.cmpi ne, %1, %c0_i32_0 : i32
    scf.if %2 {
      %cst_14 = arith.constant 0.000000e+00 : f32
      %19 = vector.broadcast %cst_14 : f32 to vector<1x8x128xf32>
      %c0_15 = arith.constant 0 : index
      %c0_16 = arith.constant 0 : index
      %c0_17 = arith.constant 0 : index
      %20 = vector.load %arg5[%c0_15, %c0_16, %c0_17] : memref<1x8x128xf32, #tpu.memory_space<vmem>>, vector<1x8x128xf32>
      tpu.vector_store %arg5[%c0_15, %c0_16, %c0_17], %19 {strides = array<i32>} : memref<1x8x128xf32, #tpu.memory_space<vmem>>, vector<1x8x128xf32>,
    } else {
    }
    %cst = arith.constant 0.000000e+00 : f32
    %3 = vector.broadcast %cst : f32 to vector<8x128xf32>
    %c0 = arith.constant 0 : index
    %c0_1 = arith.constant 0 : index
    %4 = vector.load %arg2[%c0, %c0_1] : memref<8x128xf32, #tpu.memory_space<vmem>>, vector<8x128xf32>
    %cst_2 = arith.constant 5.000000e-01 : f32
    %5 = vector.broadcast %cst_2 : f32 to vector<8x128xf32>
    %6 = arith.mulf %4, %5 : vector<8x128xf32>
    %c0_3 = arith.constant 0 : index
    %c0_4 = arith.constant 0 : index
    %7 = vector.load %arg3[%c0_3, %c0_4] : memref<8x128xf32, #tpu.memory_space<vmem>>, vector<8x128xf32>
    %8 = arith.subf %6, %7 : vector<8x128xf32>
    %9 = arith.mulf %8, %8 : vector<8x128xf32>
    %c0_5 = arith.constant 0 : index
    %c0_6 = arith.constant 0 : index
    %10 = vector.load %arg4[%c0_5, %c0_6] : memref<8x128xf32, #tpu.memory_space<vmem>>, vector<8x128xf32>
    %11 = arith.mulf %9, %10 : vector<8x128xf32>
    %12 = vector.shape_cast %11 : vector<8x128xf32> to vector<1x8x128xf32>
    %cst_7 = arith.constant dense<0.000000e+00> : vector<8x128xf32>
    %13 = vector.multi_reduction <add>, %12, %cst_7 [0] : vector<1x8x128xf32> to vector<8x128xf32>
    %14 = arith.addf %3, %13 : vector<8x128xf32>
    %c0_8 = arith.constant 0 : index
    %c0_9 = arith.constant 0 : index
    %c0_10 = arith.constant 0 : index
    %15 = vector.load %arg5[%c0_8, %c0_9, %c0_10] : memref<1x8x128xf32, #tpu.memory_space<vmem>>, vector<1x8x128xf32>
    %16 = vector.shape_cast %14 : vector<8x128xf32> to vector<1x8x128xf32>
    %17 = arith.addf %15, %16 : vector<1x8x128xf32>
    %c0_11 = arith.constant 0 : index
    %c0_12 = arith.constant 0 : index
    %c0_13 = arith.constant 0 : index
    %18 = vector.load %arg5[%c0_11, %c0_12, %c0_13] : memref<1x8x128xf32, #tpu.memory_space<vmem>>, vector<1x8x128xf32>
    tpu.vector_store %arg5[%c0_11, %c0_12, %c0_13], %17 {strides = array<i32>} : memref<1x8x128xf32, #tpu.memory_space<vmem>>, vector<1x8x128xf32>,
    return
  }
  func.func @transform_0(%arg0: i32, %arg1: i32) -> (i32, i32) {
    %c1_i32 = arith.constant 1 : i32
    %0 = arith.muli %arg0, %c1_i32 : i32
    %1 = arith.addi %0, %arg1 : i32
    %c0_i32 = arith.constant 0 : i32
    %c0_i32_0 = arith.constant 0 : i32
    return %1, %c0_i32 : i32, i32
  }
  func.func @transform_1(%arg0: i32, %arg1: i32) -> (i32, i32) {
    %c1_i32 = arith.constant 1 : i32
    %0 = arith.muli %arg0, %c1_i32 : i32
    %1 = arith.addi %0, %arg1 : i32
    %c0_i32 = arith.constant 0 : i32
    %c0_i32_0 = arith.constant 0 : i32
    return %1, %c0_i32 : i32, i32
  }
  func.func @transform_2(%arg0: i32, %arg1: i32) -> (i32, i32) {
    %c1_i32 = arith.constant 1 : i32
    %0 = arith.muli %arg0, %c1_i32 : i32
    %1 = arith.addi %0, %arg1 : i32
    %c0_i32 = arith.constant 0 : i32
    %c0_i32_0 = arith.constant 0 : i32
    return %1, %c0_i32 : i32, i32
  }
  func.func @transform_3(%arg0: i32, %arg1: i32) -> (i32, i32, i32) {
    %c0_i32 = arith.constant 0 : i32
    %c0_i32_0 = arith.constant 0 : i32
    %c0_i32_1 = arith.constant 0 : i32
    return %arg0, %c0_i32, %c0_i32_0 : i32, i32, i32
  }
}

</mosaic_0001>

<llo_original>
// kernel: tpu_custom_call.1
$region0: #{tpu_custom_call.1}
  #allocation0 [shape = 'u32[]', space=smem, size = 0x4, offset = 0x4, fixed_abs, tag = 'smem constant byte address 0x4 - core index']
  #allocation1 [shape = 'u32[144,128]{1,0:T(1,128)}', space=vmem, size = 0x12000, scoped, tag = 'internal scratch']
  %s0 = inlined_call_operand.hbm [shape: f32[8,128], index: 0, kind: input, shape index: {}]
  %s1 = inlined_call_operand.hbm [shape: f32[8,128], index: 1, kind: input, shape index: {}]
  %s2 = inlined_call_operand.hbm [shape: f32[8,128], index: 2, kind: input, shape index: {}]
  %s3 = inlined_call_operand.hbm [shape: f32[1,8,128], index: 3, kind: output, shape index: {}]
  %s4 = sld [smem:[#allocation0]]
  $region38: #{tpu_custom_call.1} parent=0
    _
  %s6 = ssub.s32 1, %s4
  %s7 = scalar_select 0, %s6, %s4
  $region1: #{tpu_custom_call.1} parent=0
    #allocation2 [shape = 'u8[4096]{0}', space=vmem, size = 0x1000, scoped, tag = 'input window, operand 0, single buffered']
    #allocation3 [shape = 's32[1]{0}', space=sflag, size = 0x4, scoped, tag = 'scoped memory for tpu_custom_call.1']
    #allocation4 [shape = 's32[1]{0}', space=sflag, size = 0x4, scoped, tag = 'scoped memory for tpu_custom_call.1']
    #allocation5 [shape = 'u8[4096]{0}', space=vmem, size = 0x1000, scoped, tag = 'input window, operand 1, single buffered']
    #allocation6 [shape = 's32[1]{0}', space=sflag, size = 0x4, scoped, tag = 'scoped memory for tpu_custom_call.1']
    #allocation7 [shape = 'u8[4096]{0}', space=vmem, size = 0x1000, scoped, tag = 'input window, operand 2, single buffered']
    #allocation8 [shape = 'u8[4096]{0}', space=vmem, size = 0x1000, scoped, tag = 'output window, operand 0, single buffered']
    %8 = vsyncpa [#allocation3], 0
    %9 = vsyncpa [#allocation6], 0
    %10 = vsyncpa [#allocation4], 0
    // Predicated region
    $region2: #{tpu_custom_call.1} parent=1 // pred_check
      _
    $region3: #{tpu_custom_call.1} parent=1 // pred_check_branch
      %12 = sbr.rel (0) target = $region5
    $region4: #{tpu_custom_call.1} parent=1 // pred_region
      %s13 = sadd.s32 0, 0
      %s15 = ssub.s32 128, 128
      %16 = vsyncadd [#allocation3], %s15
      %s17 = smul.addr %s13, 128
      %s18 = scalar_lea.hbm %s0, %s17
      %s20 = sshll.u32 [#allocation2], 4
      %s21 = int_to_ptr.vmem [resolvable:$true] %s20
      %23 = dma.hbm_to_vmem [thread:$0]  %s18, 128, %s21, [#allocation3]
    $region5: #{tpu_custom_call.1} parent=1 // pred_fallthru
      _
    // Predicated region
    $region6: #{tpu_custom_call.1} parent=1 // pred_check
      _
    $region7: #{tpu_custom_call.1} parent=1 // pred_check_branch
      %25 = sbr.rel (0) target = $region9
    $region8: #{tpu_custom_call.1} parent=1 // pred_region
      %s26 = sadd.s32 0, 0
      %s28 = ssub.s32 128, 128
      %29 = vsyncadd [#allocation6], %s28
      %s30 = smul.addr %s26, 128
      %s31 = scalar_lea.hbm %s1, %s30
      %s33 = sshll.u32 [#allocation5], 4
      %s34 = int_to_ptr.vmem [resolvable:$true] %s33
      %36 = dma.hbm_to_vmem [thread:$0]  %s31, 128, %s34, [#allocation6]
    $region9: #{tpu_custom_call.1} parent=1 // pred_fallthru
      _
    // Predicated region
    $region10: #{tpu_custom_call.1} parent=1 // pred_check
      _
    $region11: #{tpu_custom_call.1} parent=1 // pred_check_branch
      %38 = sbr.rel (0) target = $region13
    $region12: #{tpu_custom_call.1} parent=1 // pred_region
      %s39 = sadd.s32 0, 0
      %s41 = ssub.s32 128, 128
      %42 = vsyncadd [#allocation6], %s41
      %s43 = smul.addr %s39, 128
      %s44 = scalar_lea.hbm %s2, %s43
      %s46 = sshll.u32 [#allocation7], 4
      %s47 = int_to_ptr.vmem [resolvable:$true] %s46
      %49 = dma.hbm_to_vmem [thread:$0]  %s44, 128, %s47, [#allocation6]
    $region13: #{tpu_custom_call.1} parent=1 // pred_fallthru
      _
    // Predicated region
    $region14: #{tpu_custom_call.1} parent=1 // pred_check
      _
    $region15: #{tpu_custom_call.1} parent=1 // pred_check_branch
      %51 = sbr.rel (0) target = $region17
    $region16: #{tpu_custom_call.1} parent=1 // pred_region
      %52 = dma.done [#allocation3], 128
    $region17: #{tpu_custom_call.1} parent=1 // pred_fallthru
      _
    // Predicated region
    $region18: #{tpu_custom_call.1} parent=1 // pred_check
      _
    $region19: #{tpu_custom_call.1} parent=1 // pred_check_branch
      %54 = sbr.rel (0) target = $region21
    $region20: #{tpu_custom_call.1} parent=1 // pred_region
      %55 = dma.done [#allocation6], 128
    $region21: #{tpu_custom_call.1} parent=1 // pred_fallthru
      _
    // Predicated region
    $region22: #{tpu_custom_call.1} parent=1 // pred_check
      _
    $region23: #{tpu_custom_call.1} parent=1 // pred_check_branch
      %57 = sbr.rel (0) target = $region25
    $region24: #{tpu_custom_call.1} parent=1 // pred_region
      %58 = dma.done [#allocation6], 128
    $region25: #{tpu_custom_call.1} parent=1 // pred_fallthru
      _
    %s59 = sadd.s32 0, 0
    %s60 = sadd.s32 0, 0
    %s61 = sadd.s32 0, 0
    %p62 = scmp.eq.s32.totalorder 0, 0
    // Predicated region
    $region26: #{tpu_custom_call.1} parent=1 // pred_check
      %p63 = pneg %p62
    $region27: #{tpu_custom_call.1} parent=1 // pred_check_branch
      %65 = sbr.rel (%p63) target = $region29
    $region28: #{tpu_custom_call.1} parent=1 // pred_region
      %66 = vst [vmem:[#allocation8] sm:$0xff] 0.0
    $region29: #{tpu_custom_call.1} parent=1 // pred_fallthru
      _
    %v67 = vld [vmem:[#allocation2] sm:$0xff]
    %v68 = vmul.f32 %v67, 0.5
    %v69 = vld [vmem:[#allocation5] sm:$0xff]
    %v70 = vsub.f32 %v68, %v69
    %v71 = vmul.f32 %v70, %v70
    %v72 = vld [vmem:[#allocation7] sm:$0xff]
    %v73 = vmul.f32 %v71, %v72
    %v74 = vadd.f32 %v73, 0.0
    %v75 = vadd.f32 %v74, 0.0
    %v76 = vld [vmem:[#allocation8] sm:$0xff]
    %v77 = vadd.f32 %v76, %v75
    %78 = vst [vmem:[#allocation8] sm:$0xff] %v77
    // Predicated region
    $region30: #{tpu_custom_call.1} parent=1 // pred_check
      _
    $region31: #{tpu_custom_call.1} parent=1 // pred_check_branch
      %80 = sbr.rel (0) target = $region33
    $region32: #{tpu_custom_call.1} parent=1 // pred_region
      %s82 = ssub.s32 128, 128
      %83 = vsyncadd [#allocation4], %s82
      %s85 = sshll.u32 [#allocation8], 4
      %s86 = int_to_ptr.vmem [resolvable:$true] %s85
      %88 = dma.vmem_to_hbm [thread:$0]  %s86, 128, %s3, [#allocation4]
    $region33: #{tpu_custom_call.1} parent=1 // pred_fallthru
      _
    // Predicated region
    $region34: #{tpu_custom_call.1} parent=1 // pred_check
      _
    $region35: #{tpu_custom_call.1} parent=1 // pred_check_branch
      %90 = sbr.rel (0) target = $region37
    $region36: #{tpu_custom_call.1} parent=1 // pred_region
      %91 = dma.done [#allocation4], 128
    $region37: #{tpu_custom_call.1} parent=1 // pred_fallthru
      _
    %92 = vsyncpa [#allocation3], 1
    %93 = vsyncpa [#allocation6], 1
    %94 = vsyncpa [#allocation4], 1

</llo_original>
